<compile_context>
chip_gen: v6e
topology: v6e:2x2x1
jax: 0.10.0
libtpu: 0.0.40
codegen_flags: <defaults>
</compile_context>

<pallas_src>
import math
from functools import partial

import jax
import jax.numpy as jnp
from jax.experimental import pallas as pl
from jax.experimental.pallas import tpu as pltpu


def _round_up(x, m):
    return ((x + m - 1) // m) * m


def _param_linear_kernel(x_ref, w_ref, b_ref, o_ref, acc_ref, *, tn):
    """One (tm, tn) output tile: accumulate x @ [Wh|Wa|Wb] over K blocks, then fuse
    bias add + chunk + (x_hat * a + b) on the last K step (f32 epilogue)."""
    k = pl.program_id(2)

    @pl.when(k == 0)
    def _():
        acc_ref[...] = jnp.zeros_like(acc_ref)

    acc_ref[...] += jnp.dot(x_ref[...], w_ref[...],
                            preferred_element_type=jnp.float32)

    @pl.when(k == pl.num_programs(2) - 1)
    def _():
        y = acc_ref[...] + b_ref[...].astype(jnp.float32)   # (tm, 3*tn)
        x_hat = y[:, 0 * tn:1 * tn]
        a     = y[:, 1 * tn:2 * tn]
        b     = y[:, 2 * tn:3 * tn]
        o_ref[...] = (x_hat * a + b).astype(o_ref.dtype)


def parametrized_linear(x, weight, bias, out_dim, *, tm=256, tn=256, tk=512):
    """Fused ParametrizedLinear forward.

    x:      (B, S, in_dim)       features on the last axis (nn.Linear convention)
    weight: (3*out_dim, in_dim)  PyTorch nn.Linear layout
    bias:   (3*out_dim,) or None
    """
    B, S, in_dim = x.shape
    M = B * S
    dtype = x.dtype
    if bias is None:
        bias = jnp.zeros((3 * out_dim,), dtype=dtype)

    # ---- tile sizes, re-derived from the actual shapes (multiples of (8, 128)) ----
    tm = _round_up(max(tm, 8), 8)
    tn = _round_up(max(tn, 128), 128)
    tk = _round_up(max(tk, 128), 128)

    tm_eff = min(tm, _round_up(M, 8))          # shrink for tiny M
    m_pad = _round_up(M, tm_eff)

    n_pad = _round_up(out_dim, 128)            # lane-dense output
    tn_eff = math.gcd(tn, n_pad)               # >= 128 and divides n_pad

    if in_dim <= tk:                           # single K step: block == full dim
        k_pad, tk_eff = in_dim, in_dim
    else:
        k_pad = _round_up(in_dim, 128)
        tk_eff = math.gcd(tk, k_pad)           # >= 128 and divides k_pad

    nm = m_pad // tm_eff
    nn_blocks = n_pad // tn_eff
    nk = k_pad // tk_eff

    # ---- glue: pad + pack the three weight chunks per output N-block ----
    # Packed layout: for N-block j, columns [j*3*tn : (j+1)*3*tn] hold
    # [Wh[:, j-th tn cols] | Wa[...] | Wb[...]], so the kernel does a single matmul
    # and slices x_hat / a / b at static offsets tn, 2*tn.  (In a real model this
    # packing is done once per parameter update, not per forward call.)
    x2 = x.reshape(M, in_dim)
    if m_pad != M or k_pad != in_dim:
        x2 = jnp.pad(x2, ((0, m_pad - M), (0, k_pad - in_dim)))

    wt = weight.T                                            # (in_dim, 3*out_dim)
    chunks = [wt[:, c * out_dim:(c + 1) * out_dim] for c in range(3)]
    chunks = [jnp.pad(w, ((0, k_pad - in_dim), (0, n_pad - out_dim))) for w in chunks]
    w_packed = (jnp.stack(chunks, axis=1)                    # (k_pad, 3, n_pad)
                .reshape(k_pad, 3, nn_blocks, tn_eff)
                .transpose(0, 2, 1, 3)                       # (k_pad, nn, 3, tn)
                .reshape(k_pad, nn_blocks * 3 * tn_eff))

    bias = bias.astype(dtype)
    bchunks = [jnp.pad(bias[c * out_dim:(c + 1) * out_dim], (0, n_pad - out_dim))
               for c in range(3)]
    b_packed = (jnp.stack(bchunks, axis=0)                   # (3, n_pad)
                .reshape(3, nn_blocks, tn_eff)
                .transpose(1, 0, 2)                          # (nn, 3, tn)
                .reshape(1, nn_blocks * 3 * tn_eff))

    # ---- BlockSpecs ----
    x_spec   = pl.BlockSpec((tm_eff, tk_eff),     lambda i, j, k: (i, k))
    w_spec   = pl.BlockSpec((tk_eff, 3 * tn_eff), lambda i, j, k: (k, j))
    b_spec   = pl.BlockSpec((1, 3 * tn_eff),      lambda i, j, k: (0, j))
    out_spec = pl.BlockSpec((tm_eff, tn_eff),     lambda i, j, k: (i, j))
    # w_spec / b_spec are grid-invariant along i (and b_spec along k), so they are
    # not re-DMA'd on those steps; their per-tile VMEM footprint is already small.

    flops = 2 * m_pad * k_pad * (3 * n_pad) + 2 * m_pad * n_pad
    bytes_accessed = (x2.size * x2.dtype.itemsize
                      + w_packed.size * w_packed.dtype.itemsize
                      + b_packed.size * b_packed.dtype.itemsize
                      + m_pad * n_pad * x2.dtype.itemsize)
    cost = pl.CostEstimate(flops=flops, transcendentals=0,
                           bytes_accessed=bytes_accessed)

    out2 = pl.pallas_call(
        partial(_param_linear_kernel, tn=tn_eff),
        out_shape=jax.ShapeDtypeStruct((m_pad, n_pad), dtype),
        grid_spec=pltpu.PrefetchScalarGridSpec(
            num_scalar_prefetch=0,
            grid=(nm, nn_blocks, nk),
            in_specs=[x_spec, w_spec, b_spec],
            out_specs=out_spec,
            scratch_shapes=[pltpu.VMEM((tm_eff, 3 * tn_eff), jnp.float32)]),
        compiler_params=pltpu.CompilerParams(
            dimension_semantics=("parallel", "parallel", "arbitrary"),
            vmem_limit_bytes=32 * 1024 * 1024),
        cost_estimate=cost,
    )(x2, w_packed, b_packed)

    return out2[:M, :out_dim].reshape(B, S, out_dim)


def _reference(x, weight, bias, out_dim):
    y = jnp.einsum("bsi,oi->bso", x, weight) + bias
    x_hat = y[..., 0 * out_dim:1 * out_dim]
    a     = y[..., 1 * out_dim:2 * out_dim]
    b     = y[..., 2 * out_dim:3 * out_dim]
    return x_hat * a + b


def _check(B, S, in_dim, out_dim, *, seed, **tiles):
    key = jax.random.PRNGKey(seed)
    kx, kw, kb = jax.random.split(key, 3)
    # Deterministic init mimicking nn.Linear's uniform(-1/sqrt(in_dim), 1/sqrt(in_dim)).
    bound = 1.0 / (in_dim ** 0.5)
    x      = jax.random.normal(kx, (B, S, in_dim), dtype=jnp.float32)
    weight = jax.random.uniform(kw, (3 * out_dim, in_dim), dtype=jnp.float32,
                                minval=-bound, maxval=bound)
    bias   = jax.random.uniform(kb, (3 * out_dim,), dtype=jnp.float32,
                                minval=-bound, maxval=bound)

    out = parametrized_linear(x, weight, bias, out_dim, **tiles)
    out = jax.block_until_ready(out)

    ref = _reference(x, weight, bias, out_dim)
    assert out.shape == (B, S, out_dim)
    assert jnp.allclose(out, ref, atol=1e-4, rtol=1e-4), "mismatch vs reference"


if __name__ == "__main__":
    # Small shape matching the module defaults (single grid point).
    _check(2, 8, 32, 32, seed=0)
    # Multi-tile shape: exercises K accumulation (nk=2), N packing (nn=2) and padding.
    _check(2, 8, 256, 160, seed=1, tm=8, tn=128, tk=128)

    # TODO(synk): as_1x1_conv=True branch (Conv1d 1x1, chunk along dim=-2) is the same
    # matmul under a (B, C, T) layout transpose; not exercised here.
    print("KERNEL_OK")
</pallas_src>

<mosaic_0001>
module attributes {stable_mosaic.version = 11 : i64} {
  func.func @_param_linear_kernel(%arg0: i32, %arg1: i32, %arg2: i32, %arg3: memref<16x32xf32, #tpu.memory_space<vmem>>, %arg4: memref<32x384xf32, #tpu.memory_space<vmem>>, %arg5: memref<1x384xf32, #tpu.memory_space<vmem>>, %arg6: memref<16x128xf32, #tpu.memory_space<vmem>>, %arg7: memref<16x384xf32, #tpu.memory_space<vmem>>) attributes {dimension_semantics = [#tpu.dimension_semantics<parallel>, #tpu.dimension_semantics<parallel>, #tpu.dimension_semantics<arbitrary>], iteration_bounds = array<i64: 1, 1, 1>, scalar_prefetch = 0 : i64, scratch_operands = 1 : i64, tpu.core_type = #tpu.core_type<tc>, window_params = [{transform_indices = @transform_0, window_bounds = array<i64: 16, 32>}, {transform_indices = @transform_1, window_bounds = array<i64: 32, 384>}, {transform_indices = @transform_2, window_bounds = array<i64: 1, 384>}, {transform_indices = @transform_3, window_bounds = array<i64: 16, 128>}]} {
    %c0_i32 = arith.constant 0 : i32
    %0 = arith.cmpi eq, %arg2, %c0_i32 : i32
    %1 = arith.extui %0 : i1 to i32
    %c0_i32_0 = arith.constant 0 : i32
    %2 = arith.cmpi ne, %1, %c0_i32_0 : i32
    scf.if %2 {
      %cst_10 = arith.constant 0.000000e+00 : f32
      %12 = vector.broadcast %cst_10 : f32 to vector<16x384xf32>
      %c0_11 = arith.constant 0 : index
      %c0_12 = arith.constant 0 : index
      %13 = vector.load %arg7[%c0_11, %c0_12] : memref<16x384xf32, #tpu.memory_space<vmem>>, vector<16x384xf32>
      tpu.vector_store %arg7[%c0_11, %c0_12], %12 {strides = array<i32>} : memref<16x384xf32, #tpu.memory_space<vmem>>, vector<16x384xf32>,
    } else {
    }
    %c0 = arith.constant 0 : index
    %c0_1 = arith.constant 0 : index
    %3 = vector.load %arg7[%c0, %c0_1] : memref<16x384xf32, #tpu.memory_space<vmem>>, vector<16x384xf32>
    %c0_2 = arith.constant 0 : index
    %c0_3 = arith.constant 0 : index
    %4 = vector.load %arg3[%c0_2, %c0_3] : memref<16x32xf32, #tpu.memory_space<vmem>>, vector<16x32xf32>
    %c0_4 = arith.constant 0 : index
    %c0_5 = arith.constant 0 : index
    %5 = vector.load %arg4[%c0_4, %c0_5] : memref<32x384xf32, #tpu.memory_space<vmem>>, vector<32x384xf32>
    %cst = arith.constant dense<0.000000e+00> : vector<16x384xf32>
    %6 = tpu.matmul %4, %5, %cst {dimension_numbers = #tpu.dot_dimension_numbers<[1], [0], [0], [1], [0, 0, 1, 1], [], []>} : vector<16x32xf32>, vector<32x384xf32>, vector<16x384xf32> -> vector<16x384xf32>
    %7 = arith.addf %3, %6 : vector<16x384xf32>
    %c0_6 = arith.constant 0 : index
    %c0_7 = arith.constant 0 : index
    %8 = vector.load %arg7[%c0_6, %c0_7] : memref<16x384xf32, #tpu.memory_space<vmem>>, vector<16x384xf32>
    tpu.vector_store %arg7[%c0_6, %c0_7], %7 {strides = array<i32>} : memref<16x384xf32, #tpu.memory_space<vmem>>, vector<16x384xf32>,
    %c0_i32_8 = arith.constant 0 : i32
    %9 = arith.cmpi eq, %arg2, %c0_i32_8 : i32
    %10 = arith.extui %9 : i1 to i32
    %c0_i32_9 = arith.constant 0 : i32
    %11 = arith.cmpi ne, %10, %c0_i32_9 : i32
    scf.if %11 {
      %c0_10 = arith.constant 0 : index
      %c0_11 = arith.constant 0 : index
      %12 = vector.load %arg7[%c0_10, %c0_11] : memref<16x384xf32, #tpu.memory_space<vmem>>, vector<16x384xf32>
      %c0_12 = arith.constant 0 : index
      %c0_13 = arith.constant 0 : index
      %13 = vector.load %arg5[%c0_12, %c0_13] : memref<1x384xf32, #tpu.memory_space<vmem>>, vector<1x384xf32>
      %14 = vector.broadcast %13 : vector<1x384xf32> to vector<16x384xf32>
      %15 = arith.addf %12, %14 : vector<16x384xf32>
      %16 = vector.extract_strided_slice %15 {offsets = [0, 0], sizes = [16, 128], strides = [1, 1]} : vector<16x384xf32> to vector<16x128xf32>
      %17 = vector.extract_strided_slice %15 {offsets = [0, 128], sizes = [16, 128], strides = [1, 1]} : vector<16x384xf32> to vector<16x128xf32>
      %18 = vector.extract_strided_slice %15 {offsets = [0, 256], sizes = [16, 128], strides = [1, 1]} : vector<16x384xf32> to vector<16x128xf32>
      %19 = arith.mulf %16, %17 : vector<16x128xf32>
      %20 = arith.addf %19, %18 : vector<16x128xf32>
      %c0_14 = arith.constant 0 : index
      %c0_15 = arith.constant 0 : index
      %21 = vector.load %arg6[%c0_14, %c0_15] : memref<16x128xf32, #tpu.memory_space<vmem>>, vector<16x128xf32>
      tpu.vector_store %arg6[%c0_14, %c0_15], %20 {strides = array<i32>} : memref<16x128xf32, #tpu.memory_space<vmem>>, vector<16x128xf32>,
    } else {
    }
    return
  }
  func.func @transform_0(%arg0: i32, %arg1: i32, %arg2: i32) -> (i32, i32) {
    %c0_i32 = arith.constant 0 : i32
    return %arg0, %arg2 : i32, i32
  }
  func.func @transform_1(%arg0: i32, %arg1: i32, %arg2: i32) -> (i32, i32) {
    %c0_i32 = arith.constant 0 : i32
    return %arg2, %arg1 : i32, i32
  }
  func.func @transform_2(%arg0: i32, %arg1: i32, %arg2: i32) -> (i32, i32) {
    %c0_i32 = arith.constant 0 : i32
    %c0_i32_0 = arith.constant 0 : i32
    return %c0_i32, %arg1 : i32, i32
  }
  func.func @transform_3(%arg0: i32, %arg1: i32, %arg2: i32) -> (i32, i32) {
    %c0_i32 = arith.constant 0 : i32
    return %arg0, %arg1 : i32, i32
  }
}

</mosaic_0001>

<llo_original>
// kernel: tpu_custom_call.1
$region0: #{tpu_custom_call.1}
  #allocation0 [shape = 'u32[]', space=smem, size = 0x4, offset = 0x4, fixed_abs, tag = 'smem constant byte address 0x4 - core index']
  #allocation1 [shape = 'u32[144,128]{1,0:T(1,128)}', space=vmem, size = 0x12000, scoped, tag = 'internal scratch']
  #allocation2 [shape = 'f32[16,384]{1,0:T(8,128)}', space=vmem, size = 0x6000, scoped, tag = 'scratch operand']
  %s0 = inlined_call_operand.hbm [shape: f32[16,32], index: 0, kind: input, shape index: {}]
  %s1 = inlined_call_operand.hbm [shape: f32[32,384], index: 1, kind: input, shape index: {}]
  %s2 = inlined_call_operand.vmem [shape: f32[1,384], index: 2, kind: input, shape index: {}]
  %s3 = inlined_call_operand.hbm [shape: f32[16,128], index: 3, kind: output, shape index: {}]
  %s4 = sld [smem:[#allocation0]]
  $region38: #{tpu_custom_call.1} parent=0
    _
  %s6 = ssub.s32 1, %s4
  %s7 = scalar_select 0, %s6, %s4
  $region1: #{tpu_custom_call.1} parent=0
    #allocation3 [shape = 'u8[8192]{0}', space=vmem, size = 0x2000, scoped, tag = 'input window, operand 0, single buffered']
    #allocation4 [shape = 's32[1]{0}', space=sflag, size = 0x4, scoped, tag = 'scoped memory for tpu_custom_call.1']
    #allocation5 [shape = 's32[1]{0}', space=sflag, size = 0x4, scoped, tag = 'scoped memory for tpu_custom_call.1']
    #allocation6 [shape = 'u8[49152]{0}', space=vmem, size = 0xc000, scoped, tag = 'input window, operand 1, single buffered']
    #allocation7 [shape = 's32[1]{0}', space=sflag, size = 0x4, scoped, tag = 'scoped memory for tpu_custom_call.1']
    #allocation8 [shape = 'u8[8192]{0}', space=vmem, size = 0x2000, scoped, tag = 'output window, operand 0, single buffered']
    %8 = vsyncpa [#allocation4], 0
    %9 = vsyncpa [#allocation7], 0
    %10 = vsyncpa [#allocation5], 0
    // Predicated region
    $region2: #{tpu_custom_call.1} parent=1 // pred_check
      _
    $region3: #{tpu_custom_call.1} parent=1 // pred_check_branch
      %12 = sbr.rel (0) target = $region5
    $region4: #{tpu_custom_call.1} parent=1 // pred_region
      %s14 = ssub.s32 256, 256
      %15 = vsyncadd [#allocation4], %s14
      %s16 = sshll.u32 [#allocation3], 4
      %s17 = int_to_ptr.vmem [resolvable:$true] %s16
      %22 = dma.hbm_to_vmem [thread:$0]  %s0, 256, %s17, [#allocation4], 128, 128, 8
    $region5: #{tpu_custom_call.1} parent=1 // pred_fallthru
      _
    // Predicated region
    $region6: #{tpu_custom_call.1} parent=1 // pred_check
      _
    $region7: #{tpu_custom_call.1} parent=1 // pred_check_branch
      %24 = sbr.rel (0) target = $region9
    $region8: #{tpu_custom_call.1} parent=1 // pred_region
      %s26 = ssub.s32 1536, 1536
      %27 = vsyncadd [#allocation7], %s26
      %s28 = sshll.u32 [#allocation6], 4
      %s29 = int_to_ptr.vmem [resolvable:$true] %s28
      %34 = dma.hbm_to_vmem [thread:$0]  %s1, 1536, %s29, [#allocation7], 384, 384, 24
    $region9: #{tpu_custom_call.1} parent=1 // pred_fallthru
      _
    // Predicated region
    $region10: #{tpu_custom_call.1} parent=1 // pred_check
      _
    $region11: #{tpu_custom_call.1} parent=1 // pred_check_branch
      %36 = sbr.rel (0) target = $region13
    $region12: #{tpu_custom_call.1} parent=1 // pred_region
      _
    $region13: #{tpu_custom_call.1} parent=1 // pred_fallthru
      _
    // Predicated region
    $region14: #{tpu_custom_call.1} parent=1 // pred_check
      _
    $region15: #{tpu_custom_call.1} parent=1 // pred_check_branch
      %38 = sbr.rel (0) target = $region17
    $region16: #{tpu_custom_call.1} parent=1 // pred_region
      %39 = dma.done [#allocation4], 256
    $region17: #{tpu_custom_call.1} parent=1 // pred_fallthru
      _
    // Predicated region
    $region18: #{tpu_custom_call.1} parent=1 // pred_check
      _
    $region19: #{tpu_custom_call.1} parent=1 // pred_check_branch
      %41 = sbr.rel (0) target = $region21
    $region20: #{tpu_custom_call.1} parent=1 // pred_region
      %42 = dma.done [#allocation7], 1536
    $region21: #{tpu_custom_call.1} parent=1 // pred_fallthru
      _
    %p43 = scmp.eq.s32.totalorder 0, 0
    // Predicated region
    $region22: #{tpu_custom_call.1} parent=1 // pred_check
      %p44 = pneg %p43
    $region23: #{tpu_custom_call.1} parent=1 // pred_check_branch
      %46 = sbr.rel (%p44) target = $region25
    $region24: #{tpu_custom_call.1} parent=1 // pred_region
      %47 = vst [vmem:[#allocation2] sm:$0xff] 0.0
      %48 = vst [vmem:[#allocation2 + $0x8] sm:$0xff] 0.0
      %49 = vst [vmem:[#allocation2 + $0x10] sm:$0xff] 0.0
      %50 = vst [vmem:[#allocation2 + $0x18] sm:$0xff] 0.0
      %51 = vst [vmem:[#allocation2 + $0x20] sm:$0xff] 0.0
      %52 = vst [vmem:[#allocation2 + $0x28] sm:$0xff] 0.0
    $region25: #{tpu_custom_call.1} parent=1 // pred_fallthru
      _
    %v53 = vld [vmem:[#allocation2] sm:$0xff]
    %v54 = vld [vmem:[#allocation2 + $0x8] sm:$0xff]
    %v55 = vld [vmem:[#allocation2 + $0x10] sm:$0xff]
    %v56 = vld [vmem:[#allocation2 + $0x18] sm:$0xff]
    %v57 = vld [vmem:[#allocation2 + $0x20] sm:$0xff]
    %v58 = vld [vmem:[#allocation2 + $0x28] sm:$0xff]
    %v59 = vld [vmem:[#allocation3] sm:$0xff]
    %v60 = vld [vmem:[#allocation3 + $0x8] sm:$0xff]
    %v61 = vld [vmem:[#allocation6] sm:$0xff]
    %v62 = vld [vmem:[#allocation6 + $0x8] sm:$0xff]
    %v63 = vld [vmem:[#allocation6 + $0x10] sm:$0xff]
    %v64 = vld [vmem:[#allocation6 + $0x18] sm:$0xff]
    %v65 = vld [vmem:[#allocation6 + $0x20] sm:$0xff]
    %v66 = vld [vmem:[#allocation6 + $0x28] sm:$0xff]
    %v67 = vld [vmem:[#allocation6 + $0x30] sm:$0xff]
    %v68 = vld [vmem:[#allocation6 + $0x38] sm:$0xff]
    %v69 = vld [vmem:[#allocation6 + $0x40] sm:$0xff]
    %v70 = vld [vmem:[#allocation6 + $0x48] sm:$0xff]
    %v71 = vld [vmem:[#allocation6 + $0x50] sm:$0xff]
    %v72 = vld [vmem:[#allocation6 + $0x58] sm:$0xff]
    %vm73 = vcmask 261120
    %v75 = vsel %vm73, %v59, 0
    %v78 = vsel %vm73, %v60, 0
    %80 = vmatprep.subr.mxu0 0.0
    %81 = vmatpush1.msra.mxu0 0.0
    %82 = vmatprep.subr.mxu0 0.0
    %83 = vmatpush1.msra.mxu0 0.0
    %84 = vmatprep.subr.mxu0 0.0
    %85 = vmatpush1.msra.mxu0 0.0
    %86 = vmatprep.subr.mxu0 0.0
    %87 = vmatpush1.msra.mxu0 0.0
    %88 = vmatprep.subr.mxu0 0.0
    %89 = vmatpush1.msra.mxu0 0.0
    %90 = vmatprep.subr.mxu0 0.0
    %91 = vmatpush1.msra.mxu0 0.0
    %92 = vmatprep.subr.mxu0 0.0
    %93 = vmatpush1.msra.mxu0 0.0
    %94 = vmatprep.subr.mxu0 0.0
    %95 = vmatpush1.msra.mxu0 0.0
    %96 = vmatprep.subr.mxu0 0.0
    %97 = vmatpush1.msra.mxu0 0.0
    %98 = vmatprep.subr.mxu0 0.0
    %99 = vmatpush1.msra.mxu0 0.0
    %100 = vmatprep.subr.mxu0 0.0
    %101 = vmatpush1.msra.mxu0 0.0
    %102 = vmatprep.subr.mxu0 0.0
    %103 = vmatpush1.msra.mxu0 0.0
    %104 = vmatprep.subr.mxu0 %v71
    %105 = vmatpush1.msra.mxu0 %v70
    %106 = vmatprep.subr.mxu0 %v68
    %107 = vmatpush1.msra.mxu0 %v67
    %108 = vmatprep.subr.mxu0 %v65
    %109 = vmatpush1.msra.mxu0 %v64
    %110 = vmatprep.subr.mxu0 %v62
    %111 = vmatpush1.msra.mxu0 %v61
    %112 = vmatprep.subr.mxu0 0.0
    %113 = vmatpush2.msra.mxu0 0.0
    %114 = vmatprep.subr.mxu0 0.0
    %115 = vmatpush2.msra.mxu0 0.0
    %116 = vmatprep.subr.mxu0 0.0
    %117 = vmatpush2.msra.mxu0 0.0
    %118 = vmatprep.subr.mxu0 0.0
    %119 = vmatpush2.msra.mxu0 0.0
    %120 = vmatprep.subr.mxu0 0.0
    %121 = vmatpush2.msra.mxu0 0.0
    %122 = vmatprep.subr.mxu0 0.0
    %123 = vmatpush2.msra.mxu0 0.0
    %124 = vmatprep.subr.mxu0 0.0
    %125 = vmatpush2.msra.mxu0 0.0
    %126 = vmatprep.subr.mxu0 0.0
    %127 = vmatpush2.msra.mxu0 0.0
    %128 = vmatprep.subr.mxu0 0.0
    %129 = vmatpush2.msra.mxu0 0.0
    %130 = vmatprep.subr.mxu0 0.0
    %131 = vmatpush2.msra.mxu0 0.0
    %132 = vmatprep.subr.mxu0 0.0
    %133 = vmatpush2.msra.mxu0 0.0
    %134 = vmatprep.subr.mxu0 0.0
    %135 = vmatpush2.msra.mxu0 0.0
    %136 = vmatprep.subr.mxu0 0.0
    %137 = vmatpush2.msra.mxu0 0.0
    %138 = vmatprep.subr.mxu0 0.0
    %139 = vmatpush2.msra.mxu0 0.0
    %140 = vmatprep.subr.mxu0 0.0
    %141 = vmatpush2.msra.mxu0 0.0
    %142 = vmatprep.subr.mxu0 0.0
    %143 = vmatpush2.msra.mxu0 0.0
    %144 = vmatprep.mubr.f32.mxu0 0.0
    %145 = vmatmul.mubr.f32.gmra.mxu0 %v75
    %v146 = vpop.f32.mrf.mxu0
    %v147 = vadd.f32 0.0, %v146
    %v148 = vpop.f32.mrf.mxu0
    %v149 = vadd.f32 0.0, %v148
    %150 = vmatprep.mubr.f32.mxu0 0.0
    %151 = vmatmul.mubr.f32.gmra.mxu0 %v78
    %v152 = vpop.f32.mrf.mxu0
    %v153 = vadd.f32 0.0, %v152
    %v154 = vpop.f32.mrf.mxu0
    %v155 = vadd.f32 0.0, %v154
    %156 = vdwg.mxu0
    %157 = vmatprep.subr.mxu0 0.0
    %158 = vmatpush1.msra.mxu0 0.0
    %159 = vmatprep.subr.mxu0 0.0
    %160 = vmatpush1.msra.mxu0 0.0
    %161 = vmatprep.subr.mxu0 0.0
    %162 = vmatpush1.msra.mxu0 0.0
    %163 = vmatprep.subr.mxu0 0.0
    %164 = vmatpush1.msra.mxu0 0.0
    %165 = vmatprep.subr.mxu0 0.0
    %166 = vmatpush1.msra.mxu0 0.0
    %167 = vmatprep.subr.mxu0 0.0
    %168 = vmatpush1.msra.mxu0 0.0
    %169 = vmatprep.subr.mxu0 0.0
    %170 = vmatpush1.msra.mxu0 0.0
    %171 = vmatprep.subr.mxu0 0.0
    %172 = vmatpush1.msra.mxu0 0.0
    %173 = vmatprep.subr.mxu0 0.0
    %174 = vmatpush1.msra.mxu0 0.0
    %175 = vmatprep.subr.mxu0 0.0
    %176 = vmatpush1.msra.mxu0 0.0
    %177 = vmatprep.subr.mxu0 0.0
    %178 = vmatpush1.msra.mxu0 0.0
    %179 = vmatprep.subr.mxu0 0.0
    %180 = vmatpush1.msra.mxu0 0.0
    %181 = vmatprep.subr.mxu0 0.0
    %182 = vmatpush1.msra.mxu0 %v72
    %183 = vmatprep.subr.mxu0 0.0
    %184 = vmatpush1.msra.mxu0 %v69
    %185 = vmatprep.subr.mxu0 0.0
    %186 = vmatpush1.msra.mxu0 %v66
    %187 = vmatprep.subr.mxu0 0.0
    %188 = vmatpush1.msra.mxu0 %v63
    %189 = vmatprep.subr.mxu0 0.0
    %190 = vmatpush2.msra.mxu0 0.0
    %191 = vmatprep.subr.mxu0 0.0
    %192 = vmatpush2.msra.mxu0 0.0
    %193 = vmatprep.subr.mxu0 0.0
    %194 = vmatpush2.msra.mxu0 0.0
    %195 = vmatprep.subr.mxu0 0.0
    %196 = vmatpush2.msra.mxu0 0.0
    %197 = vmatprep.subr.mxu0 0.0
    %198 = vmatpush2.msra.mxu0 0.0
    %199 = vmatprep.subr.mxu0 0.0
    %200 = vmatpush2.msra.mxu0 0.0
    %201 = vmatprep.subr.mxu0 0.0
    %202 = vmatpush2.msra.mxu0 0.0
    %203 = vmatprep.subr.mxu0 0.0
    %204 = vmatpush2.msra.mxu0 0.0
    %205 = vmatprep.subr.mxu0 0.0
    %206 = vmatpush2.msra.mxu0 0.0
    %207 = vmatprep.subr.mxu0 0.0
    %208 = vmatpush2.msra.mxu0 0.0
    %209 = vmatprep.subr.mxu0 0.0
    %210 = vmatpush2.msra.mxu0 0.0
    %211 = vmatprep.subr.mxu0 0.0
    %212 = vmatpush2.msra.mxu0 0.0
    %213 = vmatprep.subr.mxu0 0.0
    %214 = vmatpush2.msra.mxu0 0.0
    %215 = vmatprep.subr.mxu0 0.0
    %216 = vmatpush2.msra.mxu0 0.0
    %217 = vmatprep.subr.mxu0 0.0
    %218 = vmatpush2.msra.mxu0 0.0
    %219 = vmatprep.subr.mxu0 0.0
    %220 = vmatpush2.msra.mxu0 0.0
    %221 = vmatprep.mubr.f32.mxu0 0.0
    %222 = vmatmul.mubr.f32.gmra.mxu0 %v75
    %v223 = vpop.f32.mrf.mxu0
    %v224 = vadd.f32 0.0, %v223
    %v225 = vpop.f32.mrf.mxu0
    %226 = vmatprep.mubr.f32.mxu0 0.0
    %227 = vmatmul.mubr.f32.gmra.mxu0 %v78
    %v228 = vpop.f32.mrf.mxu0
    %v229 = vadd.f32 0.0, %v228
    %v230 = vpop.f32.mrf.mxu0
    %231 = vdwg.mxu0
    %v232 = vadd.f32 %v53, %v147
    %v233 = vadd.f32 %v54, %v149
    %v234 = vadd.f32 %v55, %v224
    %v235 = vadd.f32 %v56, %v153
    %v236 = vadd.f32 %v57, %v155
    %v237 = vadd.f32 %v58, %v229
    %238 = vst [vmem:[#allocation2] sm:$0xff] %v232
    %239 = vst [vmem:[#allocation2 + $0x8] sm:$0xff] %v233
    %240 = vst [vmem:[#allocation2 + $0x10] sm:$0xff] %v234
    %241 = vst [vmem:[#allocation2 + $0x18] sm:$0xff] %v235
    %242 = vst [vmem:[#allocation2 + $0x20] sm:$0xff] %v236
    %243 = vst [vmem:[#allocation2 + $0x28] sm:$0xff] %v237
    // Predicated region
    $region26: #{tpu_custom_call.1} parent=1 // pred_check
      %p244 = pneg %p43
    $region27: #{tpu_custom_call.1} parent=1 // pred_check_branch
      %246 = sbr.rel (%p244) target = $region29
    $region28: #{tpu_custom_call.1} parent=1 // pred_region
      %v247 = vld [vmem:[#allocation2] sm:$0xff]
      %v248 = vld [vmem:[#allocation2 + $0x8] sm:$0xff]
      %v249 = vld [vmem:[#allocation2 + $0x10] sm:$0xff]
      %v250 = vld [vmem:[#allocation2 + $0x18] sm:$0xff]
      %v251 = vld [vmem:[#allocation2 + $0x20] sm:$0xff]
      %v252 = vld [vmem:[#allocation2 + $0x28] sm:$0xff]
      %v253 = vld [vmem:[%s2] sm:$0x7]
      %v255 = vlaneseq
      %v256 = vshrl.u32 %v255, 7
      %v257 = vsub.s32 0, %v256
      %v258 = vrot.slane %v253, %v257
      %v259 = vlaneseq
      %v260 = vshrl.u32 %v259, 7
      %v261 = vsub.s32 1, %v260
      %v262 = vrot.slane %v253, %v261
      %v263 = vlaneseq
      %v264 = vshrl.u32 %v263, 7
      %v265 = vsub.s32 2, %v264
      %v266 = vrot.slane %v253, %v265
      %v270 = vadd.f32 %v247, %v258
      %v271 = vadd.f32 %v248, %v262
      %v272 = vadd.f32 %v249, %v266
      %v273 = vadd.f32 %v250, %v258
      %v274 = vadd.f32 %v251, %v262
      %v275 = vadd.f32 %v252, %v266
      %v276 = vmul.f32 %v270, %v271
      %v277 = vmul.f32 %v273, %v274
      %v278 = vadd.f32 %v276, %v272
      %v279 = vadd.f32 %v277, %v275
      %280 = vst [vmem:[#allocation8] sm:$0xff] %v278
      %281 = vst [vmem:[#allocation8 + $0x8] sm:$0xff] %v279
    $region29: #{tpu_custom_call.1} parent=1 // pred_fallthru
      _
    // Predicated region
    $region30: #{tpu_custom_call.1} parent=1 // pred_check
      _
    $region31: #{tpu_custom_call.1} parent=1 // pred_check_branch
      %283 = sbr.rel (0) target = $region33
    $region32: #{tpu_custom_call.1} parent=1 // pred_region
      %s285 = ssub.s32 256, 256
      %286 = vsyncadd [#allocation5], %s285
      %s287 = sshll.u32 [#allocation8], 4
      %s288 = int_to_ptr.vmem [resolvable:$true] %s287
      %293 = dma.vmem_to_hbm [thread:$0]  %s288, 256, %s3, [#allocation5], 128, 128, 8
    $region33: #{tpu_custom_call.1} parent=1 // pred_fallthru
      _
    // Predicated region
    $region34: #{tpu_custom_call.1} parent=1 // pred_check
      _
    $region35: #{tpu_custom_call.1} parent=1 // pred_check_branch
      %295 = sbr.rel (0) target = $region37
    $region36: #{tpu_custom_call.1} parent=1 // pred_region
      %296 = dma.done [#allocation5], 256
    $region37: #{tpu_custom_call.1} parent=1 // pred_fallthru
      _
    %297 = vsyncpa [#allocation4], 1
    %298 = vsyncpa [#allocation7], 1
    %299 = vsyncpa [#allocation5], 1

</llo_original>
